<compile_context>
chip_gen: v7x
topology: tpu7x:2x2x1
jax: 0.10.0
libtpu: 0.0.40
codegen_flags: <defaults>
</compile_context>

<pallas_src>
import functools

import jax
import jax.numpy as jnp
from jax import lax
from jax.experimental import pallas as pl
from jax.experimental.pallas import tpu as pltpu


def _round_up(x, m):
    return ((x + m - 1) // m) * m


# ---------------------------------------------------------------------------
# Fast path: tables resident in VMEM, gather = one-hot(idx) @ table on the MXU.
# ---------------------------------------------------------------------------
def _mf_vmem_kernel(u_ids_ref, i_ids_ref,      # (tb, 1) int32 id tiles (VMEM)
                    user_ref, item_ref,        # full (padded) tables (VMEM)
                    o_ref,                     # (1, tb) lane-dense output tile
                    *, precision):
    tb = u_ids_ref.shape[0]
    n_users_p, d_p = user_ref.shape
    n_items_p = item_ref.shape[0]

    u_ids = u_ids_ref[...]                     # (tb, 1) int32
    i_ids = i_ids_ref[...]                     # (tb, 1) int32

    # One-hot gather on the MXU.  Padded table rows are explicit zeros and the
    # one-hot never selects them (ids < n_users <= n_users_p).
    u_oh = (u_ids == lax.broadcasted_iota(jnp.int32, (tb, n_users_p), 1)
            ).astype(jnp.float32)
    i_oh = (i_ids == lax.broadcasted_iota(jnp.int32, (tb, n_items_p), 1)
            ).astype(jnp.float32)
    u_rows = jnp.dot(u_oh, user_ref[...].astype(jnp.float32),
                     precision=precision, preferred_element_type=jnp.float32)
    i_rows = jnp.dot(i_oh, item_ref[...].astype(jnp.float32),
                     precision=precision, preferred_element_type=jnp.float32)

    prod = u_rows * i_rows                     # (tb, Dp) f32, padded cols are 0

    # Reduce over D as ones(1, Dp) @ prod^T on the MXU -> (1, tb) lane-dense.
    ones_row = jnp.ones((1, d_p), jnp.float32)
    row_sums = lax.dot_general(
        ones_row, prod,
        dimension_numbers=(((1,), (1,)), ((), ())),
        precision=precision, preferred_element_type=jnp.float32)
    o_ref[...] = row_sums.astype(o_ref.dtype)


# ---------------------------------------------------------------------------
# General path: tables stay in HBM; per-tile row gather via async DMAs.
# ---------------------------------------------------------------------------
def _mf_hbm_gather_kernel(u_idx_ref, i_idx_ref,   # scalar prefetch (SMEM)
                          user_hbm, item_hbm,     # embedding tables (HBM)
                          o_ref,                  # (1, tb) output tile
                          u_buf, i_buf, sems,     # VMEM scratch + DMA sems
                          *, unroll, precision):
    tb, d = u_buf.shape
    base = pl.program_id(0) * tb
    n_iters = tb // unroll                        # wrapper guarantees divisibility

    # Issue ALL 2*tb row copies (no in-flight window, no in-loop waits),
    # manually unrolled so the scheduler can co-issue descriptor setup.
    def _issue(c, carry):
        r0 = pl.multiple_of(c * unroll, unroll)
        for k in range(unroll):
            r = r0 + k
            u_row = u_idx_ref[base + r]
            i_row = i_idx_ref[base + r]
            pltpu.make_async_copy(user_hbm.at[pl.ds(u_row, 1), :],
                                  u_buf.at[pl.ds(r, 1), :], sems.at[0]).start()
            pltpu.make_async_copy(item_hbm.at[pl.ds(i_row, 1), :],
                                  i_buf.at[pl.ds(r, 1), :], sems.at[1]).start()
        return carry

    lax.fori_loop(0, n_iters, _issue, None)

    # Drain once at the end.  Every row copy has an identical shape per table,
    # so a same-shaped dummy descriptor retires one completion per wait.
    def _drain(c, carry):
        for _ in range(unroll):
            pltpu.make_async_copy(user_hbm.at[pl.ds(0, 1), :],
                                  u_buf.at[pl.ds(0, 1), :], sems.at[0]).wait()
            pltpu.make_async_copy(item_hbm.at[pl.ds(0, 1), :],
                                  i_buf.at[pl.ds(0, 1), :], sems.at[1]).wait()
        return carry

    lax.fori_loop(0, n_iters, _drain, None)

    # TODO(synk): overlap compute with the drain by processing 128-row
    # sub-chunks on per-chunk semaphores (a single counting semaphore cannot
    # gate per-chunk compute because completions are unordered).

    prod = u_buf[...].astype(jnp.float32) * i_buf[...].astype(jnp.float32)
    ones_row = jnp.ones((1, d), jnp.float32)
    row_sums = lax.dot_general(
        ones_row, prod,
        dimension_numbers=(((1,), (1,)), ((), ())),
        precision=precision, preferred_element_type=jnp.float32)
    o_ref[...] = row_sums.astype(o_ref.dtype)


def _choose_tb(B, tb_max):
    tb = max(8, min(tb_max, _round_up(B, 8)))
    tb = (tb // 128) * 128 if tb >= 128 else _round_up(tb, 8)
    if B >= 256:
        # v7x megacore: keep >= 2 grid tiles so both TensorCores get work.
        tb = min(tb, _round_up((B + 1) // 2, 128))
    return tb


def mf_forward(user_table, item_table, u_idx, i_idx, *,
               tb_max=1024, force_hbm_gather=False, mxu_precision=None):
    """Pallas equivalent of MF.forward(u, i) = (user(u) * item(i)).sum(1).

    mxu_precision: pass lax.Precision.HIGHEST if a bit-faithful f32 reduction
    is required; default (None) uses the MXU's standard f32 passes.
    """
    n_users, D = user_table.shape
    n_items, D_i = item_table.shape
    assert D == D_i
    B = u_idx.shape[0]

    tb = _choose_tb(B, tb_max)
    B_pad = _round_up(B, tb)
    n_tiles = B_pad // tb

    # Pad the batch with index 0 (a valid row); padded outputs are discarded.
    u_idx_p = jnp.pad(u_idx.astype(jnp.int32), (0, B_pad - B))
    i_idx_p = jnp.pad(i_idx.astype(jnp.int32), (0, B_pad - B))

    # ---- fast-path feasibility: tables (+ one-hots + row intermediates) must
    # fit comfortably under every generation's scoped-VMEM default (16 MiB on
    # v5e), assuming the pipeline double-buffers the table blocks.
    nu_p = _round_up(n_users, 128)
    ni_p = _round_up(n_items, 128)
    d_p = _round_up(D, 128)
    itemsize = max(user_table.dtype.itemsize, item_table.dtype.itemsize)
    est_vmem = (2 * (nu_p + ni_p) * d_p * itemsize        # tables (x2 buffers)
                + tb * (nu_p + ni_p) * 4                  # one-hot intermediates
                + 3 * tb * d_p * 4)                       # gathered rows + prod
    use_fast = (not force_hbm_gather
                and max(n_users, n_items) <= 2048
                and est_vmem <= 12 * 1024 * 1024)
    # TODO(synk): medium tables that fit VMEM but are too wide for one-hot could
    # use a per-row gather from the VMEM-resident table instead (raising
    # vmem_limit_bytes per generation: ~48 MiB on v5e/v6e, ~24 MiB on v7x).

    if use_fast:
        # Zero-pad tables to (8,128)-aligned shapes so all MXU ops are unmasked.
        user_p = jnp.pad(user_table, ((0, nu_p - n_users), (0, d_p - D)))
        item_p = jnp.pad(item_table, ((0, ni_p - n_items), (0, d_p - D)))
        kernel = functools.partial(_mf_vmem_kernel, precision=mxu_precision)
        out = pl.pallas_call(
            kernel,
            out_shape=jax.ShapeDtypeStruct((1, B_pad), jnp.float32),
            grid=(n_tiles,),
            in_specs=[
                pl.BlockSpec((tb, 1), lambda b: (b, 0)),        # user ids
                pl.BlockSpec((tb, 1), lambda b: (b, 0)),        # item ids
                pl.BlockSpec((nu_p, d_p), lambda b: (0, 0)),    # user table (VMEM)
                pl.BlockSpec((ni_p, d_p), lambda b: (0, 0)),    # item table (VMEM)
            ],
            out_specs=pl.BlockSpec((1, tb), lambda b: (0, b)),
            compiler_params=pltpu.CompilerParams(
                dimension_semantics=("parallel",)),
        )(u_idx_p[:, None], i_idx_p[:, None], user_p, item_p)
    else:
        unroll = 8 if tb % 8 == 0 else 1   # tb is a multiple of 8 by construction
        kernel = functools.partial(_mf_hbm_gather_kernel,
                                   unroll=unroll, precision=mxu_precision)
        out = pl.pallas_call(
            kernel,
            out_shape=jax.ShapeDtypeStruct((1, B_pad), jnp.float32),
            grid_spec=pltpu.PrefetchScalarGridSpec(
                num_scalar_prefetch=2,
                grid=(n_tiles,),
                in_specs=[
                    pl.BlockSpec(memory_space=pl.ANY),    # user table stays in HBM
                    pl.BlockSpec(memory_space=pl.ANY),    # item table stays in HBM
                ],
                out_specs=pl.BlockSpec((1, tb), lambda b, u_ref, i_ref: (0, b)),
                scratch_shapes=[
                    pltpu.VMEM((tb, D), user_table.dtype),
                    pltpu.VMEM((tb, D), item_table.dtype),
                    pltpu.SemaphoreType.DMA((2,)),
                ],
            ),
            compiler_params=pltpu.CompilerParams(
                dimension_semantics=("parallel",)),
        )(u_idx_p, i_idx_p, user_table, item_table)

    return out[0, :B]


if __name__ == "__main__":
    # Deterministic synthetic parameters (N(0, 0.05) like nn.init.normal_).
    n_users, n_items, embed_dim = 50, 80, 64
    batch = 32

    key = jax.random.PRNGKey(0)
    k_u, k_i, k_uidx, k_iidx = jax.random.split(key, 4)
    user_table = 0.05 * jax.random.normal(k_u, (n_users, embed_dim), dtype=jnp.float32)
    item_table = 0.05 * jax.random.normal(k_i, (n_items, embed_dim), dtype=jnp.float32)

    u_idx = jax.random.randint(k_uidx, (batch,), 0, n_users, dtype=jnp.int32)
    i_idx = jax.random.randint(k_iidx, (batch,), 0, n_items, dtype=jnp.int32)

    # Pure-JAX reference.
    ref = jnp.sum(jnp.take(user_table, u_idx, axis=0)
                  * jnp.take(item_table, i_idx, axis=0), axis=1)

    # Fast path (VMEM-resident tables, one-hot MXU gather) - taken at these sizes.
    out = jax.block_until_ready(mf_forward(user_table, item_table, u_idx, i_idx))
    assert out.shape == (batch,)
    # Tolerance covers the MXU's reduced-precision f32 passes; reference values
    # are O(2e-2), so any wrong-row gather would fail by >10x this bound.
    assert jnp.allclose(out, ref, atol=2e-3, rtol=1e-2), \
        float(jnp.max(jnp.abs(out - ref)))

    # Also exercise the general HBM-gather path (used when tables exceed VMEM).
    out_g = jax.block_until_ready(
        mf_forward(user_table, item_table, u_idx, i_idx, force_hbm_gather=True))
    assert out_g.shape == (batch,)
    assert jnp.allclose(out_g, ref, atol=2e-3, rtol=1e-2), \
        float(jnp.max(jnp.abs(out_g - ref)))

    print("KERNEL_OK")
</pallas_src>

<mosaic_0001>
module attributes {stable_mosaic.version = 11 : i64} {
  func.func @_mf_vmem_kernel(%arg0: i32, %arg1: memref<32x1xi32, #tpu.memory_space<vmem>>, %arg2: memref<32x1xi32, #tpu.memory_space<vmem>>, %arg3: memref<128x128xf32, #tpu.memory_space<vmem>>, %arg4: memref<128x128xf32, #tpu.memory_space<vmem>>, %arg5: memref<1x32xf32, #tpu.memory_space<vmem>>) attributes {dimension_semantics = [#tpu.dimension_semantics<parallel>], iteration_bounds = array<i64: 1>, scalar_prefetch = 0 : i64, scratch_operands = 0 : i64, tpu.core_type = #tpu.core_type<tc>, window_params = [{transform_indices = @transform_0, window_bounds = array<i64: 32, 1>}, {transform_indices = @transform_1, window_bounds = array<i64: 32, 1>}, {pipeline_mode = #tpu.pipeline_mode<synchronous>, transform_indices = @transform_2, window_bounds = array<i64: 128, 128>}, {pipeline_mode = #tpu.pipeline_mode<synchronous>, transform_indices = @transform_3, window_bounds = array<i64: 128, 128>}, {transform_indices = @transform_4, window_bounds = array<i64: 1, 32>}]} {
    %c0 = arith.constant 0 : index
    %c0_0 = arith.constant 0 : index
    %0 = vector.load %arg1[%c0, %c0_0] : memref<32x1xi32, #tpu.memory_space<vmem>>, vector<32x1xi32>
    %c0_1 = arith.constant 0 : index
    %c0_2 = arith.constant 0 : index
    %1 = vector.load %arg2[%c0_1, %c0_2] : memref<32x1xi32, #tpu.memory_space<vmem>>, vector<32x1xi32>
    %2 = tpu.iota {dimensions = array<i32: 1>} : vector<32x128xi32>
    %3 = vector.broadcast %0 : vector<32x1xi32> to vector<32x128xi32>
    %4 = arith.cmpi eq, %3, %2 : vector<32x128xi32>
    %5 = arith.extui %4 : vector<32x128xi1> to vector<32x128xi32>
    %6 = arith.sitofp %5 : vector<32x128xi32> to vector<32x128xf32>
    %7 = tpu.iota {dimensions = array<i32: 1>} : vector<32x128xi32>
    %8 = vector.broadcast %1 : vector<32x1xi32> to vector<32x128xi32>
    %9 = arith.cmpi eq, %8, %7 : vector<32x128xi32>
    %10 = arith.extui %9 : vector<32x128xi1> to vector<32x128xi32>
    %11 = arith.sitofp %10 : vector<32x128xi32> to vector<32x128xf32>
    %c0_3 = arith.constant 0 : index
    %c0_4 = arith.constant 0 : index
    %12 = vector.load %arg3[%c0_3, %c0_4] : memref<128x128xf32, #tpu.memory_space<vmem>>, vector<128x128xf32>
    %cst = arith.constant dense<0.000000e+00> : vector<32x128xf32>
    %13 = tpu.matmul %6, %12, %cst {dimension_numbers = #tpu.dot_dimension_numbers<[1], [0], [0], [1], [0, 0, 1, 1], [], []>} : vector<32x128xf32>, vector<128x128xf32>, vector<32x128xf32> -> vector<32x128xf32>
    %c0_5 = arith.constant 0 : index
    %c0_6 = arith.constant 0 : index
    %14 = vector.load %arg4[%c0_5, %c0_6] : memref<128x128xf32, #tpu.memory_space<vmem>>, vector<128x128xf32>
    %cst_7 = arith.constant dense<0.000000e+00> : vector<32x128xf32>
    %15 = tpu.matmul %11, %14, %cst_7 {dimension_numbers = #tpu.dot_dimension_numbers<[1], [0], [0], [1], [0, 0, 1, 1], [], []>} : vector<32x128xf32>, vector<128x128xf32>, vector<32x128xf32> -> vector<32x128xf32>
    %16 = arith.mulf %13, %15 : vector<32x128xf32>
    %cst_8 = arith.constant 1.000000e+00 : f32
    %17 = vector.broadcast %cst_8 : f32 to vector<1x128xf32>
    %cst_9 = arith.constant dense<0.000000e+00> : vector<1x32xf32>
    %18 = tpu.matmul %17, %16, %cst_9 {dimension_numbers = #tpu.dot_dimension_numbers<[1], [1], [0], [0], [0, 0, 1, 0], [], []>} : vector<1x128xf32>, vector<32x128xf32>, vector<1x32xf32> -> vector<1x32xf32>
    %c0_10 = arith.constant 0 : index
    %c0_11 = arith.constant 0 : index
    %19 = vector.load %arg5[%c0_10, %c0_11] : memref<1x32xf32, #tpu.memory_space<vmem>>, vector<1x32xf32>
    tpu.vector_store %arg5[%c0_10, %c0_11], %18 {strides = array<i32>} : memref<1x32xf32, #tpu.memory_space<vmem>>, vector<1x32xf32>,
    return
  }
  func.func @transform_0(%arg0: i32) -> (i32, i32) {
    %c0_i32 = arith.constant 0 : i32
    %c0_i32_0 = arith.constant 0 : i32
    return %arg0, %c0_i32 : i32, i32
  }
  func.func @transform_1(%arg0: i32) -> (i32, i32) {
    %c0_i32 = arith.constant 0 : i32
    %c0_i32_0 = arith.constant 0 : i32
    return %arg0, %c0_i32 : i32, i32
  }
  func.func @transform_2(%arg0: i32) -> (i32, i32) {
    %c0_i32 = arith.constant 0 : i32
    %c0_i32_0 = arith.constant 0 : i32
    %c0_i32_1 = arith.constant 0 : i32
    return %c0_i32, %c0_i32_0 : i32, i32
  }
  func.func @transform_3(%arg0: i32) -> (i32, i32) {
    %c0_i32 = arith.constant 0 : i32
    %c0_i32_0 = arith.constant 0 : i32
    %c0_i32_1 = arith.constant 0 : i32
    return %c0_i32, %c0_i32_0 : i32, i32
  }
  func.func @transform_4(%arg0: i32) -> (i32, i32) {
    %c0_i32 = arith.constant 0 : i32
    %c0_i32_0 = arith.constant 0 : i32
    return %c0_i32, %arg0 : i32, i32
  }
}

</mosaic_0001>

<llo_original>
// kernel: tpu_custom_call.1
$region0: #{tpu_custom_call.1}
  #allocation0 [shape = 'u32[]', space=smem, size = 0x4, offset = 0x4, fixed_abs, tag = 'smem constant byte address 0x4 - core index']
  #allocation1 [shape = 'u32[144,128]{1,0:T(1,128)}', space=vmem, size = 0x12000, scoped, tag = 'internal scratch']
  %s0 = inlined_call_operand.vmem [shape: s32[32,1], index: 0, kind: input, shape index: {}]
  %s1 = inlined_call_operand.vmem [shape: s32[32,1], index: 1, kind: input, shape index: {}]
  %s2 = inlined_call_operand.hbm [shape: f32[128,128], index: 2, kind: input, shape index: {}]
  %s3 = inlined_call_operand.hbm [shape: f32[128,128], index: 3, kind: input, shape index: {}]
  %s4 = inlined_call_operand.hbm [shape: f32[1,32], index: 4, kind: output, shape index: {}]
  %s5 = sld [smem:[#allocation0]]
  $region34: #{tpu_custom_call.1} parent=0
    _
  %s7 = ssub.s32 1, %s5
  %s8 = scalar_select 0, %s7, %s5
  $region1: #{tpu_custom_call.1} parent=0
    #allocation2 [shape = 'u8[65536]{0}', space=vmem, size = 0x10000, scoped, tag = 'input window, operand 2, single buffered']
    #allocation3 [shape = 's32[1]{0}', space=sflag, size = 0x4, scoped, tag = 'scoped memory for tpu_custom_call.1']
    #allocation4 [shape = 's32[1]{0}', space=sflag, size = 0x4, scoped, tag = 'scoped memory for tpu_custom_call.1']
    #allocation5 [shape = 'u8[65536]{0}', space=vmem, size = 0x10000, scoped, tag = 'input window, operand 3, single buffered']
    #allocation6 [shape = 's32[1]{0}', space=sflag, size = 0x4, scoped, tag = 'scoped memory for tpu_custom_call.1']
    #allocation7 [shape = 'u8[512]{0}', space=vmem, size = 0x400, scoped, tag = 'output window, operand 0, single buffered']
    %9 = vsyncpa [#allocation3], 0
    %10 = vsyncpa [#allocation6], 0
    %11 = vsyncpa [#allocation4], 0
    // Predicated region
    $region2: #{tpu_custom_call.1} parent=1 // pred_check
      _
    $region3: #{tpu_custom_call.1} parent=1 // pred_check_branch
      %13 = sbr.rel (0) target = $region5
    $region4: #{tpu_custom_call.1} parent=1 // pred_region
      _
    $region5: #{tpu_custom_call.1} parent=1 // pred_fallthru
      _
    // Predicated region
    $region6: #{tpu_custom_call.1} parent=1 // pred_check
      _
    $region7: #{tpu_custom_call.1} parent=1 // pred_check_branch
      %15 = sbr.rel (0) target = $region9
    $region8: #{tpu_custom_call.1} parent=1 // pred_region
      _
    $region9: #{tpu_custom_call.1} parent=1 // pred_fallthru
      _
    // Predicated region
    $region10: #{tpu_custom_call.1} parent=1 // pred_check
      _
    $region11: #{tpu_custom_call.1} parent=1 // pred_check_branch
      %17 = sbr.rel (0) target = $region13
    $region12: #{tpu_custom_call.1} parent=1 // pred_region
      %s19 = ssub.s32 2048, 2048
      %20 = vsyncadd [#allocation3], %s19
      %s21 = sshll.u32 [#allocation2], 4
      %s22 = int_to_ptr.vmem [resolvable:$true] %s21
      %27 = dma.hbm_to_vmem [thread:$0]  %s2, 2048, %s22, [#allocation3], 128, 128, 8
    $region13: #{tpu_custom_call.1} parent=1 // pred_fallthru
      _
    // Predicated region
    $region14: #{tpu_custom_call.1} parent=1 // pred_check
      _
    $region15: #{tpu_custom_call.1} parent=1 // pred_check_branch
      %29 = sbr.rel (0) target = $region17
    $region16: #{tpu_custom_call.1} parent=1 // pred_region
      %s31 = ssub.s32 2048, 2048
      %32 = vsyncadd [#allocation6], %s31
      %s33 = sshll.u32 [#allocation5], 4
      %s34 = int_to_ptr.vmem [resolvable:$true] %s33
      %39 = dma.hbm_to_vmem [thread:$0]  %s3, 2048, %s34, [#allocation6], 128, 128, 8
    $region17: #{tpu_custom_call.1} parent=1 // pred_fallthru
      _
    // Predicated region
    $region18: #{tpu_custom_call.1} parent=1 // pred_check
      _
    $region19: #{tpu_custom_call.1} parent=1 // pred_check_branch
      %41 = sbr.rel (0) target = $region21
    $region20: #{tpu_custom_call.1} parent=1 // pred_region
      %42 = dma.done [#allocation3], 2048
    $region21: #{tpu_custom_call.1} parent=1 // pred_fallthru
      _
    // Predicated region
    $region22: #{tpu_custom_call.1} parent=1 // pred_check
      _
    $region23: #{tpu_custom_call.1} parent=1 // pred_check_branch
      %44 = sbr.rel (0) target = $region25
    $region24: #{tpu_custom_call.1} parent=1 // pred_region
      %45 = dma.done [#allocation6], 2048
    $region25: #{tpu_custom_call.1} parent=1 // pred_fallthru
      _
    %v46 = vld [vmem:[%s0] sm:$0xff]
    %v47 = vld [vmem:[%s0 + $0x8] sm:$0xff]
    %v48 = vld [vmem:[%s0 + $0x10] sm:$0xff]
    %v49 = vld [vmem:[%s0 + $0x18] sm:$0xff]
    %v50 = vld [vmem:[%s1] sm:$0xff]
    %v51 = vld [vmem:[%s1 + $0x8] sm:$0xff]
    %v52 = vld [vmem:[%s1 + $0x10] sm:$0xff]
    %v53 = vld [vmem:[%s1 + $0x18] sm:$0xff]
    %v54 = vlaneseq
    %v55 = vand.u32 %v54, 127
    %56 = vset.pattern.permute.xlu0 0
    %57 = vperm.xlu0 %56, %v46
    %v58 = vpop.permute.xlu0 %57
    %59 = vset.pattern.permute.xlu0 0
    %60 = vperm.xlu0 %59, %v47
    %v61 = vpop.permute.xlu0 %60
    %62 = vset.pattern.permute.xlu0 0
    %63 = vperm.xlu0 %62, %v48
    %v64 = vpop.permute.xlu0 %63
    %65 = vset.pattern.permute.xlu0 0
    %66 = vperm.xlu0 %65, %v49
    %v67 = vpop.permute.xlu0 %66
    %vm68 = vcmp.eq.s32.totalorder %v58, %v55
    %vm69 = vcmp.eq.s32.totalorder %v61, %v55
    %vm70 = vcmp.eq.s32.totalorder %v64, %v55
    %vm71 = vcmp.eq.s32.totalorder %v67, %v55
    %v72 = vsel %vm68, 1, 0
    %v73 = vsel %vm69, 1, 0
    %v74 = vsel %vm70, 1, 0
    %v75 = vsel %vm71, 1, 0
    %v76 = vcvt.s32.f32 %v72
    %v77 = vcvt.s32.f32 %v73
    %v78 = vcvt.s32.f32 %v74
    %v79 = vcvt.s32.f32 %v75
    %80 = vset.pattern.permute.xlu0 0
    %81 = vperm.xlu0 %80, %v50
    %v82 = vpop.permute.xlu0 %81
    %83 = vset.pattern.permute.xlu0 0
    %84 = vperm.xlu0 %83, %v51
    %v85 = vpop.permute.xlu0 %84
    %86 = vset.pattern.permute.xlu0 0
    %87 = vperm.xlu0 %86, %v52
    %v88 = vpop.permute.xlu0 %87
    %89 = vset.pattern.permute.xlu0 0
    %90 = vperm.xlu0 %89, %v53
    %v91 = vpop.permute.xlu0 %90
    %vm92 = vcmp.eq.s32.totalorder %v82, %v55
    %vm93 = vcmp.eq.s32.totalorder %v85, %v55
    %vm94 = vcmp.eq.s32.totalorder %v88, %v55
    %vm95 = vcmp.eq.s32.totalorder %v91, %v55
    %v96 = vsel %vm92, 1, 0
    %v97 = vsel %vm93, 1, 0
    %v98 = vsel %vm94, 1, 0
    %v99 = vsel %vm95, 1, 0
    %v100 = vcvt.s32.f32 %v96
    %v101 = vcvt.s32.f32 %v97
    %v102 = vcvt.s32.f32 %v98
    %v103 = vcvt.s32.f32 %v99
    %v104 = vld [vmem:[#allocation2] sm:$0xff]
    %v105 = vld [vmem:[#allocation2 + $0x8] sm:$0xff]
    %v106 = vld [vmem:[#allocation2 + $0x10] sm:$0xff]
    %v107 = vld [vmem:[#allocation2 + $0x18] sm:$0xff]
    %v108 = vld [vmem:[#allocation2 + $0x20] sm:$0xff]
    %v109 = vld [vmem:[#allocation2 + $0x28] sm:$0xff]
    %v110 = vld [vmem:[#allocation2 + $0x30] sm:$0xff]
    %v111 = vld [vmem:[#allocation2 + $0x38] sm:$0xff]
    %v112 = vld [vmem:[#allocation2 + $0x40] sm:$0xff]
    %v113 = vld [vmem:[#allocation2 + $0x48] sm:$0xff]
    %v114 = vld [vmem:[#allocation2 + $0x50] sm:$0xff]
    %v115 = vld [vmem:[#allocation2 + $0x58] sm:$0xff]
    %v116 = vld [vmem:[#allocation2 + $0x60] sm:$0xff]
    %v117 = vld [vmem:[#allocation2 + $0x68] sm:$0xff]
    %v118 = vld [vmem:[#allocation2 + $0x70] sm:$0xff]
    %v119 = vld [vmem:[#allocation2 + $0x78] sm:$0xff]
    %120 = vmatprep.subr.mxu0 0.0
    %121 = vmatpush1.msra.mxu0 %v104
    %122 = vmatprep.subr.mxu0 0.0
    %123 = vmatpush1.msra.mxu0 %v105
    %124 = vmatprep.subr.mxu0 0.0
    %125 = vmatpush1.msra.mxu0 %v106
    %126 = vmatprep.subr.mxu0 0.0
    %127 = vmatpush1.msra.mxu0 %v107
    %128 = vmatprep.subr.mxu0 0.0
    %129 = vmatpush1.msra.mxu0 %v108
    %130 = vmatprep.subr.mxu0 0.0
    %131 = vmatpush1.msra.mxu0 %v109
    %132 = vmatprep.subr.mxu0 0.0
    %133 = vmatpush1.msra.mxu0 %v110
    %134 = vmatprep.subr.mxu0 0.0
    %135 = vmatpush1.msra.mxu0 %v111
    %136 = vmatprep.subr.mxu0 0.0
    %137 = vmatpush1.msra.mxu0 %v112
    %138 = vmatprep.subr.mxu0 0.0
    %139 = vmatpush1.msra.mxu0 %v113
    %140 = vmatprep.subr.mxu0 0.0
    %141 = vmatpush1.msra.mxu0 %v114
    %142 = vmatprep.subr.mxu0 0.0
    %143 = vmatpush1.msra.mxu0 %v115
    %144 = vmatprep.subr.mxu0 0.0
    %145 = vmatpush1.msra.mxu0 %v116
    %146 = vmatprep.subr.mxu0 0.0
    %147 = vmatpush1.msra.mxu0 %v117
    %148 = vmatprep.subr.mxu0 0.0
    %149 = vmatpush1.msra.mxu0 %v118
    %150 = vmatprep.subr.mxu0 0.0
    %151 = vmatpush1.msra.mxu0 %v119
    %152 = vmatprep.subr.mxu0 0.0
    %153 = vmatpush1.msra.mxu0 0.0
    %154 = vmatprep.subr.mxu0 0.0
    %155 = vmatpush1.msra.mxu0 0.0
    %156 = vmatprep.subr.mxu0 0.0
    %157 = vmatpush1.msra.mxu0 0.0
    %158 = vmatprep.subr.mxu0 0.0
    %159 = vmatpush1.msra.mxu0 0.0
    %160 = vmatprep.subr.mxu0 0.0
    %161 = vmatpush1.msra.mxu0 0.0
    %162 = vmatprep.subr.mxu0 0.0
    %163 = vmatpush1.msra.mxu0 0.0
    %164 = vmatprep.subr.mxu0 0.0
    %165 = vmatpush1.msra.mxu0 0.0
    %166 = vmatprep.subr.mxu0 0.0
    %167 = vmatpush1.msra.mxu0 0.0
    %168 = vmatprep.subr.mxu0 0.0
    %169 = vmatpush1.msra.mxu0 0.0
    %170 = vmatprep.subr.mxu0 0.0
    %171 = vmatpush1.msra.mxu0 0.0
    %172 = vmatprep.subr.mxu0 0.0
    %173 = vmatpush1.msra.mxu0 0.0
    %174 = vmatprep.subr.mxu0 0.0
    %175 = vmatpush1.msra.mxu0 0.0
    %176 = vmatprep.subr.mxu0 0.0
    %177 = vmatpush1.msra.mxu0 0.0
    %178 = vmatprep.subr.mxu0 0.0
    %179 = vmatpush1.msra.mxu0 0.0
    %180 = vmatprep.subr.mxu0 0.0
    %181 = vmatpush1.msra.mxu0 0.0
    %182 = vmatprep.subr.mxu0 0.0
    %183 = vmatpush1.msra.mxu0 0.0
    %184 = vmatprep.mubr.f32.mxu0 0.0
    %185 = vmatmul.mubr.f32.gmra.mrb[0].mxu0 %v76
    %v186 = vpop.f32.mrb[0].mxu0
    %v187 = vadd.f32 0.0, %v186
    %v188 = vpop.f32.mrb[0].mxu0
    %189 = vmatprep.mubr.f32.mxu0 0.0
    %190 = vmatmul.mubr.f32.gmra.mrb[0].mxu0 %v77
    %v191 = vpop.f32.mrb[0].mxu0
    %v192 = vadd.f32 0.0, %v191
    %v193 = vpop.f32.mrb[0].mxu0
    %194 = vmatprep.mubr.f32.mxu0 0.0
    %195 = vmatmul.mubr.f32.gmra.mrb[0].mxu0 %v78
    %v196 = vpop.f32.mrb[0].mxu0
    %v197 = vadd.f32 0.0, %v196
    %v198 = vpop.f32.mrb[0].mxu0
    %199 = vmatprep.mubr.f32.mxu0 0.0
    %200 = vmatmul.mubr.f32.gmra.mrb[0].mxu0 %v79
    %v201 = vpop.f32.mrb[0].mxu0
    %v202 = vadd.f32 0.0, %v201
    %v203 = vpop.f32.mrb[0].mxu0
    %204 = vdwg.mxu0
    %v205 = vld [vmem:[#allocation5] sm:$0xff]
    %v206 = vld [vmem:[#allocation5 + $0x8] sm:$0xff]
    %v207 = vld [vmem:[#allocation5 + $0x10] sm:$0xff]
    %v208 = vld [vmem:[#allocation5 + $0x18] sm:$0xff]
    %v209 = vld [vmem:[#allocation5 + $0x20] sm:$0xff]
    %v210 = vld [vmem:[#allocation5 + $0x28] sm:$0xff]
    %v211 = vld [vmem:[#allocation5 + $0x30] sm:$0xff]
    %v212 = vld [vmem:[#allocation5 + $0x38] sm:$0xff]
    %v213 = vld [vmem:[#allocation5 + $0x40] sm:$0xff]
    %v214 = vld [vmem:[#allocation5 + $0x48] sm:$0xff]
    %v215 = vld [vmem:[#allocation5 + $0x50] sm:$0xff]
    %v216 = vld [vmem:[#allocation5 + $0x58] sm:$0xff]
    %v217 = vld [vmem:[#allocation5 + $0x60] sm:$0xff]
    %v218 = vld [vmem:[#allocation5 + $0x68] sm:$0xff]
    %v219 = vld [vmem:[#allocation5 + $0x70] sm:$0xff]
    %v220 = vld [vmem:[#allocation5 + $0x78] sm:$0xff]
    %221 = vmatprep.subr.mxu0 0.0
    %222 = vmatpush1.msra.mxu0 %v205
    %223 = vmatprep.subr.mxu0 0.0
    %224 = vmatpush1.msra.mxu0 %v206
    %225 = vmatprep.subr.mxu0 0.0
    %226 = vmatpush1.msra.mxu0 %v207
    %227 = vmatprep.subr.mxu0 0.0
    %228 = vmatpush1.msra.mxu0 %v208
    %229 = vmatprep.subr.mxu0 0.0
    %230 = vmatpush1.msra.mxu0 %v209
    %231 = vmatprep.subr.mxu0 0.0
    %232 = vmatpush1.msra.mxu0 %v210
    %233 = vmatprep.subr.mxu0 0.0
    %234 = vmatpush1.msra.mxu0 %v211
    %235 = vmatprep.subr.mxu0 0.0
    %236 = vmatpush1.msra.mxu0 %v212
    %237 = vmatprep.subr.mxu0 0.0
    %238 = vmatpush1.msra.mxu0 %v213
    %239 = vmatprep.subr.mxu0 0.0
    %240 = vmatpush1.msra.mxu0 %v214
    %241 = vmatprep.subr.mxu0 0.0
    %242 = vmatpush1.msra.mxu0 %v215
    %243 = vmatprep.subr.mxu0 0.0
    %244 = vmatpush1.msra.mxu0 %v216
    %245 = vmatprep.subr.mxu0 0.0
    %246 = vmatpush1.msra.mxu0 %v217
    %247 = vmatprep.subr.mxu0 0.0
    %248 = vmatpush1.msra.mxu0 %v218
    %249 = vmatprep.subr.mxu0 0.0
    %250 = vmatpush1.msra.mxu0 %v219
    %251 = vmatprep.subr.mxu0 0.0
    %252 = vmatpush1.msra.mxu0 %v220
    %253 = vmatprep.subr.mxu0 0.0
    %254 = vmatpush1.msra.mxu0 0.0
    %255 = vmatprep.subr.mxu0 0.0
    %256 = vmatpush1.msra.mxu0 0.0
    %257 = vmatprep.subr.mxu0 0.0
    %258 = vmatpush1.msra.mxu0 0.0
    %259 = vmatprep.subr.mxu0 0.0
    %260 = vmatpush1.msra.mxu0 0.0
    %261 = vmatprep.subr.mxu0 0.0
    %262 = vmatpush1.msra.mxu0 0.0
    %263 = vmatprep.subr.mxu0 0.0
    %264 = vmatpush1.msra.mxu0 0.0
    %265 = vmatprep.subr.mxu0 0.0
    %266 = vmatpush1.msra.mxu0 0.0
    %267 = vmatprep.subr.mxu0 0.0
    %268 = vmatpush1.msra.mxu0 0.0
    %269 = vmatprep.subr.mxu0 0.0
    %270 = vmatpush1.msra.mxu0 0.0
    %271 = vmatprep.subr.mxu0 0.0
    %272 = vmatpush1.msra.mxu0 0.0
    %273 = vmatprep.subr.mxu0 0.0
    %274 = vmatpush1.msra.mxu0 0.0
    %275 = vmatprep.subr.mxu0 0.0
    %276 = vmatpush1.msra.mxu0 0.0
    %277 = vmatprep.subr.mxu0 0.0
    %278 = vmatpush1.msra.mxu0 0.0
    %279 = vmatprep.subr.mxu0 0.0
    %280 = vmatpush1.msra.mxu0 0.0
    %281 = vmatprep.subr.mxu0 0.0
    %282 = vmatpush1.msra.mxu0 0.0
    %283 = vmatprep.subr.mxu0 0.0
    %284 = vmatpush1.msra.mxu0 0.0
    %285 = vmatprep.mubr.f32.mxu0 0.0
    %286 = vmatmul.mubr.f32.gmra.mrb[0].mxu0 %v100
    %v287 = vpop.f32.mrb[0].mxu0
    %v288 = vadd.f32 0.0, %v287
    %v289 = vpop.f32.mrb[0].mxu0
    %290 = vmatprep.mubr.f32.mxu0 0.0
    %291 = vmatmul.mubr.f32.gmra.mrb[0].mxu0 %v101
    %v292 = vpop.f32.mrb[0].mxu0
    %v293 = vadd.f32 0.0, %v292
    %v294 = vpop.f32.mrb[0].mxu0
    %295 = vmatprep.mubr.f32.mxu0 0.0
    %296 = vmatmul.mubr.f32.gmra.mrb[0].mxu0 %v102
    %v297 = vpop.f32.mrb[0].mxu0
    %v298 = vadd.f32 0.0, %v297
    %v299 = vpop.f32.mrb[0].mxu0
    %300 = vmatprep.mubr.f32.mxu0 0.0
    %301 = vmatmul.mubr.f32.gmra.mrb[0].mxu0 %v103
    %v302 = vpop.f32.mrb[0].mxu0
    %v303 = vadd.f32 0.0, %v302
    %v304 = vpop.f32.mrb[0].mxu0
    %305 = vdwg.mxu0
    %v306 = vmul.f32 %v187, %v288
    %v307 = vmul.f32 %v192, %v293
    %v308 = vmul.f32 %v197, %v298
    %v309 = vmul.f32 %v202, %v303
    %310 = vmatprep.subr.mxu0 0.0
    %311 = vmatpush1.xpose.msra.mxu0 %v306
    %312 = vmatprep.subr.mxu0 0.0
    %313 = vmatpush1.xpose.msra.mxu0 %v307
    %314 = vmatprep.subr.mxu0 0.0
    %315 = vmatpush1.xpose.msra.mxu0 %v308
    %316 = vmatprep.subr.mxu0 0.0
    %317 = vmatpush1.xpose.msra.mxu0 %v309
    %318 = vmatprep.subr.mxu0 0.0
    %319 = vmatpush1.xpose.msra.mxu0 0.0
    %320 = vmatprep.subr.mxu0 0.0
    %321 = vmatpush1.xpose.msra.mxu0 0.0
    %322 = vmatprep.subr.mxu0 0.0
    %323 = vmatpush1.xpose.msra.mxu0 0.0
    %324 = vmatprep.subr.mxu0 0.0
    %325 = vmatpush1.xpose.msra.mxu0 0.0
    %326 = vmatprep.subr.mxu0 0.0
    %327 = vmatpush1.xpose.msra.mxu0 0.0
    %328 = vmatprep.subr.mxu0 0.0
    %329 = vmatpush1.xpose.msra.mxu0 0.0
    %330 = vmatprep.subr.mxu0 0.0
    %331 = vmatpush1.xpose.msra.mxu0 0.0
    %332 = vmatprep.subr.mxu0 0.0
    %333 = vmatpush1.xpose.msra.mxu0 0.0
    %334 = vmatprep.subr.mxu0 0.0
    %335 = vmatpush1.xpose.msra.mxu0 0.0
    %336 = vmatprep.subr.mxu0 0.0
    %337 = vmatpush1.xpose.msra.mxu0 0.0
    %338 = vmatprep.subr.mxu0 0.0
    %339 = vmatpush1.xpose.msra.mxu0 0.0
    %340 = vmatprep.subr.mxu0 0.0
    %341 = vmatpush1.xpose.msra.mxu0 0.0
    %342 = vmatprep.subr.mxu0 0.0
    %343 = vmatpush1.xpose.msra.mxu0 0.0
    %344 = vmatprep.subr.mxu0 0.0
    %345 = vmatpush1.xpose.msra.mxu0 0.0
    %346 = vmatprep.subr.mxu0 0.0
    %347 = vmatpush1.xpose.msra.mxu0 0.0
    %348 = vmatprep.subr.mxu0 0.0
    %349 = vmatpush1.xpose.msra.mxu0 0.0
    %350 = vmatprep.subr.mxu0 0.0
    %351 = vmatpush1.xpose.msra.mxu0 0.0
    %352 = vmatprep.subr.mxu0 0.0
    %353 = vmatpush1.xpose.msra.mxu0 0.0
    %354 = vmatprep.subr.mxu0 0.0
    %355 = vmatpush1.xpose.msra.mxu0 0.0
    %356 = vmatprep.subr.mxu0 0.0
    %357 = vmatpush1.xpose.msra.mxu0 0.0
    %358 = vmatprep.subr.mxu0 0.0
    %359 = vmatpush1.xpose.msra.mxu0 0.0
    %360 = vmatprep.subr.mxu0 0.0
    %361 = vmatpush1.xpose.msra.mxu0 0.0
    %362 = vmatprep.subr.mxu0 0.0
    %363 = vmatpush1.xpose.msra.mxu0 0.0
    %364 = vmatprep.subr.mxu0 0.0
    %365 = vmatpush1.xpose.msra.mxu0 0.0
    %366 = vmatprep.subr.mxu0 0.0
    %367 = vmatpush1.xpose.msra.mxu0 0.0
    %368 = vmatprep.subr.mxu0 0.0
    %369 = vmatpush1.xpose.msra.mxu0 0.0
    %370 = vmatprep.subr.mxu0 0.0
    %371 = vmatpush1.xpose.msra.mxu0 0.0
    %372 = vmatprep.subr.mxu0 0.0
    %373 = vmatpush1.xpose.msra.mxu0 0.0
    %374 = vmatprep.mubr.f32.mxu0 0.0
    %375 = vmatmul.mubr.f32.gmra.mrb[0].mxu0 1.0
    %v376 = vpop.f32.mrb[0].mxu0
    %v377 = vadd.f32 0.0, %v376
    %v378 = vpop.f32.mrb[0].mxu0
    %379 = vdwg.mxu0
    %vm380 = vcmask 253952
    %381 = vst.msk [vmem:[#allocation7] sm:$0x1] %vm380, %v377
    // Predicated region
    $region26: #{tpu_custom_call.1} parent=1 // pred_check
      _
    $region27: #{tpu_custom_call.1} parent=1 // pred_check_branch
      %383 = sbr.rel (0) target = $region29
    $region28: #{tpu_custom_call.1} parent=1 // pred_region
      %s385 = ssub.s32 16, 16
      %386 = vsyncadd [#allocation4], %s385
      %s388 = sshll.u32 [#allocation7], 4
      %s389 = int_to_ptr.vmem [resolvable:$true] %s388
      %391 = dma.vmem_to_hbm [thread:$0]  %s389, 16, %s4, [#allocation4]
    $region29: #{tpu_custom_call.1} parent=1 // pred_fallthru
      _
    // Predicated region
    $region30: #{tpu_custom_call.1} parent=1 // pred_check
      _
    $region31: #{tpu_custom_call.1} parent=1 // pred_check_branch
      %393 = sbr.rel (0) target = $region33
    $region32: #{tpu_custom_call.1} parent=1 // pred_region
      %394 = dma.done [#allocation4], 16
    $region33: #{tpu_custom_call.1} parent=1 // pred_fallthru
      _
    %395 = vsyncpa [#allocation3], 1
    %396 = vsyncpa [#allocation6], 1
    %397 = vsyncpa [#allocation4], 1

</llo_original>
